<compile_context>
chip_gen: v7x
topology: tpu7x:2x2x1
jax: 0.10.0
libtpu: 0.0.40
codegen_flags: <defaults>
</compile_context>

<pallas_src>
import functools
import math

import jax
import jax.numpy as jnp
from jax import lax
from jax.experimental import pallas as pl
from jax.experimental.pallas import tpu as pltpu

LANE = 128


def _cross_attn_kernel(q_ref, kv_ref, wq_ref, bq_ref, wk_ref, bk_ref,
                       wv_ref, bv_ref, o_ref, *, scale, use_bf16_mxu):
    # Per-grid-step tiles (leading batch dim of the block is size 1).
    q = q_ref[0]            # (tq,  d_in_q)
    kv = kv_ref[0]          # (Skv, d_in_kv)
    wq = wq_ref[...]        # (d_in_q,  d_kq_p)   resident across the grid
    wk = wk_ref[...]        # (d_in_kv, d_kq_p)
    wv = wv_ref[...]        # (d_in_kv, d_v_p)

    if use_bf16_mxu:
        q = q.astype(jnp.bfloat16)
        kv = kv.astype(jnp.bfloat16)
        wq = wq.astype(jnp.bfloat16)
        wk = wk.astype(jnp.bfloat16)
        wv = wv.astype(jnp.bfloat16)

    # ---- Projections (MXU, fp32 accumulation). 1/sqrt(d_kq) folded into Q
    #      (cheaper than scaling the (tq, Skv) scores tile). Bias add / scale
    #      in fp32 on the VPU. ----
    Q = (jnp.dot(q, wq, preferred_element_type=jnp.float32)
         + bq_ref[...]) * scale                               # (tq,  d_kq_p)
    K = jnp.dot(kv, wk, preferred_element_type=jnp.float32) + bk_ref[...]
    V = jnp.dot(kv, wv, preferred_element_type=jnp.float32) + bv_ref[...]

    # ---- Scores: contract over the shared (padded, lane-aligned) feature
    #      dim directly -- no explicit K transpose. Padded columns of Q and K
    #      are exactly zero, so they do not affect the scores. ----
    qk_a = Q.astype(jnp.bfloat16) if use_bf16_mxu else Q
    qk_b = K.astype(jnp.bfloat16) if use_bf16_mxu else K
    s = lax.dot_general(qk_a, qk_b, (((1,), (1,)), ((), ())),
                        preferred_element_type=jnp.float32)   # (tq, Skv)

    # ---- Numerically-stable softmax, statistics in fp32. ----
    m = jnp.max(s, axis=-1, keepdims=True)
    p = jnp.exp(s - m)
    l = jnp.sum(p, axis=-1, keepdims=True)                    # (tq, 1)

    pv_p = p.astype(jnp.bfloat16) if use_bf16_mxu else p
    pv_v = V.astype(jnp.bfloat16) if use_bf16_mxu else V
    ctx = jnp.dot(pv_p, pv_v, preferred_element_type=jnp.float32)  # (tq, d_v_p)

    # Exact reciprocal: one EUP op per row, essentially free; keeps accuracy.
    ctx = ctx * pl.reciprocal(l, approx=False)
    o_ref[0] = ctx.astype(o_ref.dtype)


def _pick_row_tile(sq, cap=512):
    """Largest row tile <= cap that divides Sq (multiple of 8 when tiling)."""
    if sq <= cap:
        return sq
    for t in range(cap - cap % 8, 7, -8):
        if sq % t == 0:
            return t
    return sq


def _pad_cols(w, b, d_pad):
    pad = d_pad - w.shape[1]
    return (jnp.pad(w, ((0, 0), (0, pad))), jnp.pad(b, ((0, 0), (0, pad))))


def cross_attention_b(query, key_value, params, d_out_kq, *, use_bf16_mxu=False):
    """query: (B, Sq, d_in_q); key_value: (B, Skv, d_in_kv).

    params = (wq, bq, wk, bk, wv, bv); weights (d_in, d_out), biases (1, d_out).
    """
    B, Sq, d_in_q = query.shape
    _, Skv, d_in_kv = key_value.shape
    wq, bq, wk, bk, wv, bv = params
    d_kq = wq.shape[1]
    d_v = wv.shape[1]
    assert d_kq == d_out_kq

    # Lane-dense (128-padded) feature dims: full MXU columns, unmasked stores.
    d_kq_p = pl.cdiv(d_kq, LANE) * LANE
    d_v_p = pl.cdiv(d_v, LANE) * LANE
    wq_p, bq_p = _pad_cols(wq, bq, d_kq_p)
    wk_p, bk_p = _pad_cols(wk, bk, d_kq_p)
    wv_p, bv_p = _pad_cols(wv, bv, d_v_p)

    tq = _pick_row_tile(Sq)
    assert Sq % tq == 0
    grid = (B, Sq // tq)

    kernel = functools.partial(
        _cross_attn_kernel,
        scale=1.0 / math.sqrt(float(d_out_kq)),
        use_bf16_mxu=use_bf16_mxu)

    # Weight / bias operands: same block for every grid step -> stay resident.
    def resident(shape):
        return pl.BlockSpec(shape, lambda b, qi: (0, 0))

    out_padded = pl.pallas_call(
        kernel,
        out_shape=jax.ShapeDtypeStruct((B, Sq, d_v_p), query.dtype),
        grid_spec=pltpu.PrefetchScalarGridSpec(
            num_scalar_prefetch=0,
            grid=grid,
            in_specs=[
                # streamed activations
                pl.BlockSpec((1, tq, d_in_q), lambda b, qi: (b, qi, 0)),
                pl.BlockSpec((1, Skv, d_in_kv), lambda b, qi: (b, 0, 0)),
                # resident weights / biases
                resident((d_in_q, d_kq_p)),
                resident((1, d_kq_p)),
                resident((d_in_kv, d_kq_p)),
                resident((1, d_kq_p)),
                resident((d_in_kv, d_v_p)),
                resident((1, d_v_p)),
            ],
            out_specs=pl.BlockSpec((1, tq, d_v_p), lambda b, qi: (b, qi, 0)),
        ),
        compiler_params=pltpu.CompilerParams(
            # Both axes independent -> megacore sharding on v7x.
            dimension_semantics=("parallel", "parallel")),
    )(query, key_value, wq_p, bq_p, wk_p, bk_p, wv_p, bv_p)

    # Drop the lane padding outside the kernel (cheap XLA slice).
    return out_padded[..., :d_v]


def _reference(query, key_value, params, d_out_kq):
    wq, bq, wk, bk, wv, bv = params
    hp = lax.Precision.HIGHEST
    Q = jnp.einsum("bsd,de->bse", query, wq, precision=hp) + bq
    K = jnp.einsum("bsd,de->bse", key_value, wk, precision=hp) + bk
    V = jnp.einsum("bsd,de->bse", key_value, wv, precision=hp) + bv
    s = jnp.einsum("bqd,bkd->bqk", Q, K, precision=hp) / math.sqrt(float(d_out_kq))
    p = jax.nn.softmax(s, axis=-1)
    return jnp.einsum("bqk,bkd->bqd", p, V, precision=hp)


if __name__ == "__main__":
    # Module hyperparameters (small, consistent with the forward pass).
    d_in_query, d_in_kv, d_out_kq, d_out_v = 32, 32, 16, 16
    B, Sq, Skv = 2, 8, 16

    key = jax.random.PRNGKey(0)
    ks = jax.random.split(key, 8)

    # Deterministic parameter init (PyTorch-Linear-like uniform ranges).
    def lin_init(kw, kb, d_in, d_out):
        bound = 1.0 / math.sqrt(d_in)
        w = jax.random.uniform(kw, (d_in, d_out), jnp.float32, -bound, bound)
        b = jax.random.uniform(kb, (1, d_out), jnp.float32, -bound, bound)
        return w, b

    wq, bq = lin_init(ks[0], ks[1], d_in_query, d_out_kq)
    wk, bk = lin_init(ks[2], ks[3], d_in_kv, d_out_kq)
    wv, bv = lin_init(ks[4], ks[5], d_in_kv, d_out_v)
    params = (wq, bq, wk, bk, wv, bv)

    query = jax.random.normal(ks[6], (B, Sq, d_in_query), jnp.float32)
    key_value = jax.random.normal(ks[7], (B, Skv, d_in_kv), jnp.float32)

    out = cross_attention_b(query, key_value, params, d_out_kq)
    out = jax.block_until_ready(out)

    ref = _reference(query, key_value, params, d_out_kq)
    assert out.shape == (B, Sq, d_out_v)
    # Exact softmax normalizer + fp32 MXU accumulation -> tight tolerance again.
    assert jnp.allclose(out, ref, atol=1e-4, rtol=1e-4), "mismatch vs reference"

    print("KERNEL_OK")
</pallas_src>

<mosaic_0001>
module attributes {stable_mosaic.version = 11 : i64} {
  func.func @_cross_attn_kernel(%arg0: i32, %arg1: i32, %arg2: memref<1x8x32xf32, #tpu.memory_space<vmem>>, %arg3: memref<1x16x32xf32, #tpu.memory_space<vmem>>, %arg4: memref<32x128xf32, #tpu.memory_space<vmem>>, %arg5: memref<1x128xf32, #tpu.memory_space<vmem>>, %arg6: memref<32x128xf32, #tpu.memory_space<vmem>>, %arg7: memref<1x128xf32, #tpu.memory_space<vmem>>, %arg8: memref<32x128xf32, #tpu.memory_space<vmem>>, %arg9: memref<1x128xf32, #tpu.memory_space<vmem>>, %arg10: memref<1x8x128xf32, #tpu.memory_space<vmem>>) attributes {dimension_semantics = [#tpu.dimension_semantics<parallel>, #tpu.dimension_semantics<parallel>], iteration_bounds = array<i64: 2, 1>, scalar_prefetch = 0 : i64, scratch_operands = 0 : i64, tpu.core_type = #tpu.core_type<tc>, window_params = [{transform_indices = @transform_0, window_bounds = array<i64: 1, 8, 32>}, {transform_indices = @transform_1, window_bounds = array<i64: 1, 16, 32>}, {pipeline_mode = #tpu.pipeline_mode<synchronous>, transform_indices = @transform_2, window_bounds = array<i64: 32, 128>}, {pipeline_mode = #tpu.pipeline_mode<synchronous>, transform_indices = @transform_3, window_bounds = array<i64: 1, 128>}, {pipeline_mode = #tpu.pipeline_mode<synchronous>, transform_indices = @transform_4, window_bounds = array<i64: 32, 128>}, {pipeline_mode = #tpu.pipeline_mode<synchronous>, transform_indices = @transform_5, window_bounds = array<i64: 1, 128>}, {pipeline_mode = #tpu.pipeline_mode<synchronous>, transform_indices = @transform_6, window_bounds = array<i64: 32, 128>}, {pipeline_mode = #tpu.pipeline_mode<synchronous>, transform_indices = @transform_7, window_bounds = array<i64: 1, 128>}, {transform_indices = @transform_8, window_bounds = array<i64: 1, 8, 128>}]} {
    %c0 = arith.constant 0 : index
    %c0_0 = arith.constant 0 : index
    %c0_1 = arith.constant 0 : index
    %0 = vector.load %arg2[%c0, %c0_0, %c0_1] : memref<1x8x32xf32, #tpu.memory_space<vmem>>, vector<1x8x32xf32>
    %1 = vector.shape_cast %0 : vector<1x8x32xf32> to vector<8x32xf32>
    %c0_2 = arith.constant 0 : index
    %c0_3 = arith.constant 0 : index
    %c0_4 = arith.constant 0 : index
    %2 = vector.load %arg3[%c0_2, %c0_3, %c0_4] : memref<1x16x32xf32, #tpu.memory_space<vmem>>, vector<1x16x32xf32>
    %3 = vector.shape_cast %2 : vector<1x16x32xf32> to vector<16x32xf32>
    %c0_5 = arith.constant 0 : index
    %c0_6 = arith.constant 0 : index
    %4 = vector.load %arg4[%c0_5, %c0_6] : memref<32x128xf32, #tpu.memory_space<vmem>>, vector<32x128xf32>
    %c0_7 = arith.constant 0 : index
    %c0_8 = arith.constant 0 : index
    %5 = vector.load %arg6[%c0_7, %c0_8] : memref<32x128xf32, #tpu.memory_space<vmem>>, vector<32x128xf32>
    %c0_9 = arith.constant 0 : index
    %c0_10 = arith.constant 0 : index
    %6 = vector.load %arg8[%c0_9, %c0_10] : memref<32x128xf32, #tpu.memory_space<vmem>>, vector<32x128xf32>
    %cst = arith.constant dense<0.000000e+00> : vector<8x128xf32>
    %7 = tpu.matmul %1, %4, %cst {dimension_numbers = #tpu.dot_dimension_numbers<[1], [0], [0], [1], [0, 0, 1, 1], [], []>} : vector<8x32xf32>, vector<32x128xf32>, vector<8x128xf32> -> vector<8x128xf32>
    %c0_11 = arith.constant 0 : index
    %c0_12 = arith.constant 0 : index
    %8 = vector.load %arg5[%c0_11, %c0_12] : memref<1x128xf32, #tpu.memory_space<vmem>>, vector<1x128xf32>
    %9 = vector.broadcast %8 : vector<1x128xf32> to vector<8x128xf32>
    %10 = arith.addf %7, %9 : vector<8x128xf32>
    %cst_13 = arith.constant 2.500000e-01 : f32
    %11 = vector.broadcast %cst_13 : f32 to vector<8x128xf32>
    %12 = arith.mulf %10, %11 : vector<8x128xf32>
    %cst_14 = arith.constant dense<0.000000e+00> : vector<16x128xf32>
    %13 = tpu.matmul %3, %5, %cst_14 {dimension_numbers = #tpu.dot_dimension_numbers<[1], [0], [0], [1], [0, 0, 1, 1], [], []>} : vector<16x32xf32>, vector<32x128xf32>, vector<16x128xf32> -> vector<16x128xf32>
    %c0_15 = arith.constant 0 : index
    %c0_16 = arith.constant 0 : index
    %14 = vector.load %arg7[%c0_15, %c0_16] : memref<1x128xf32, #tpu.memory_space<vmem>>, vector<1x128xf32>
    %15 = vector.broadcast %14 : vector<1x128xf32> to vector<16x128xf32>
    %16 = arith.addf %13, %15 : vector<16x128xf32>
    %cst_17 = arith.constant dense<0.000000e+00> : vector<16x128xf32>
    %17 = tpu.matmul %3, %6, %cst_17 {dimension_numbers = #tpu.dot_dimension_numbers<[1], [0], [0], [1], [0, 0, 1, 1], [], []>} : vector<16x32xf32>, vector<32x128xf32>, vector<16x128xf32> -> vector<16x128xf32>
    %c0_18 = arith.constant 0 : index
    %c0_19 = arith.constant 0 : index
    %18 = vector.load %arg9[%c0_18, %c0_19] : memref<1x128xf32, #tpu.memory_space<vmem>>, vector<1x128xf32>
    %19 = vector.broadcast %18 : vector<1x128xf32> to vector<16x128xf32>
    %20 = arith.addf %17, %19 : vector<16x128xf32>
    %cst_20 = arith.constant dense<0.000000e+00> : vector<8x16xf32>
    %21 = tpu.matmul %12, %16, %cst_20 {dimension_numbers = #tpu.dot_dimension_numbers<[1], [1], [0], [0], [0, 0, 1, 0], [], []>} : vector<8x128xf32>, vector<16x128xf32>, vector<8x16xf32> -> vector<8x16xf32>
    %cst_21 = arith.constant dense<0xFF800000> : vector<8xf32>
    %22 = vector.multi_reduction <maximumf>, %21, %cst_21 [1] : vector<8x16xf32> to vector<8xf32>
    %23 = vector.shape_cast %22 : vector<8xf32> to vector<8x1xf32>
    %24 = vector.broadcast %23 : vector<8x1xf32> to vector<8x16xf32>
    %25 = arith.subf %21, %24 : vector<8x16xf32>
    %26 = math.exp %25 : vector<8x16xf32>
    %cst_22 = arith.constant dense<0.000000e+00> : vector<8xf32>
    %27 = vector.multi_reduction <add>, %26, %cst_22 [1] : vector<8x16xf32> to vector<8xf32>
    %28 = vector.shape_cast %27 : vector<8xf32> to vector<8x1xf32>
    %cst_23 = arith.constant dense<0.000000e+00> : vector<8x128xf32>
    %29 = tpu.matmul %26, %20, %cst_23 {dimension_numbers = #tpu.dot_dimension_numbers<[1], [0], [0], [1], [0, 0, 1, 1], [], []>} : vector<8x16xf32>, vector<16x128xf32>, vector<8x128xf32> -> vector<8x128xf32>
    %30 = tpu.reciprocal %28 : vector<8x1xf32> -> vector<8x1xf32>
    %31 = vector.broadcast %30 : vector<8x1xf32> to vector<8x128xf32>
    %32 = arith.mulf %29, %31 : vector<8x128xf32>
    %c0_24 = arith.constant 0 : index
    %c0_25 = arith.constant 0 : index
    %c0_26 = arith.constant 0 : index
    %33 = vector.load %arg10[%c0_24, %c0_25, %c0_26] : memref<1x8x128xf32, #tpu.memory_space<vmem>>, vector<1x8x128xf32>
    %34 = vector.shape_cast %33 : vector<1x8x128xf32> to vector<8x128xf32>
    %35 = vector.shape_cast %32 : vector<8x128xf32> to vector<1x8x128xf32>
    tpu.vector_store %arg10[%c0_24, %c0_25, %c0_26], %35 {strides = array<i32>} : memref<1x8x128xf32, #tpu.memory_space<vmem>>, vector<1x8x128xf32>,
    return
  }
  func.func @transform_0(%arg0: i32, %arg1: i32) -> (i32, i32, i32) {
    %c0_i32 = arith.constant 0 : i32
    %c0_i32_0 = arith.constant 0 : i32
    return %arg0, %arg1, %c0_i32 : i32, i32, i32
  }
  func.func @transform_1(%arg0: i32, %arg1: i32) -> (i32, i32, i32) {
    %c0_i32 = arith.constant 0 : i32
    %c0_i32_0 = arith.constant 0 : i32
    %c0_i32_1 = arith.constant 0 : i32
    return %arg0, %c0_i32, %c0_i32_0 : i32, i32, i32
  }
  func.func @transform_2(%arg0: i32, %arg1: i32) -> (i32, i32) {
    %c0_i32 = arith.constant 0 : i32
    %c0_i32_0 = arith.constant 0 : i32
    %c0_i32_1 = arith.constant 0 : i32
    return %c0_i32, %c0_i32_0 : i32, i32
  }
  func.func @transform_3(%arg0: i32, %arg1: i32) -> (i32, i32) {
    %c0_i32 = arith.constant 0 : i32
    %c0_i32_0 = arith.constant 0 : i32
    %c0_i32_1 = arith.constant 0 : i32
    return %c0_i32, %c0_i32_0 : i32, i32
  }
  func.func @transform_4(%arg0: i32, %arg1: i32) -> (i32, i32) {
    %c0_i32 = arith.constant 0 : i32
    %c0_i32_0 = arith.constant 0 : i32
    %c0_i32_1 = arith.constant 0 : i32
    return %c0_i32, %c0_i32_0 : i32, i32
  }
  func.func @transform_5(%arg0: i32, %arg1: i32) -> (i32, i32) {
    %c0_i32 = arith.constant 0 : i32
    %c0_i32_0 = arith.constant 0 : i32
    %c0_i32_1 = arith.constant 0 : i32
    return %c0_i32, %c0_i32_0 : i32, i32
  }
  func.func @transform_6(%arg0: i32, %arg1: i32) -> (i32, i32) {
    %c0_i32 = arith.constant 0 : i32
    %c0_i32_0 = arith.constant 0 : i32
    %c0_i32_1 = arith.constant 0 : i32
    return %c0_i32, %c0_i32_0 : i32, i32
  }
  func.func @transform_7(%arg0: i32, %arg1: i32) -> (i32, i32) {
    %c0_i32 = arith.constant 0 : i32
    %c0_i32_0 = arith.constant 0 : i32
    %c0_i32_1 = arith.constant 0 : i32
    return %c0_i32, %c0_i32_0 : i32, i32
  }
  func.func @transform_8(%arg0: i32, %arg1: i32) -> (i32, i32, i32) {
    %c0_i32 = arith.constant 0 : i32
    %c0_i32_0 = arith.constant 0 : i32
    return %arg0, %arg1, %c0_i32 : i32, i32, i32
  }
}

</mosaic_0001>

<llo_original>
// kernel: tpu_custom_call.1
$region0: #{tpu_custom_call.1}
  #allocation0 [shape = 'u32[]', space=smem, size = 0x4, offset = 0x4, fixed_abs, tag = 'smem constant byte address 0x4 - core index']
  #allocation1 [shape = 'u32[144,128]{1,0:T(1,128)}', space=vmem, size = 0x12000, scoped, tag = 'internal scratch']
  %s0 = inlined_call_operand.hbm [shape: f32[2,8,32], index: 0, kind: input, shape index: {}]
  %s1 = inlined_call_operand.hbm [shape: f32[2,16,32], index: 1, kind: input, shape index: {}]
  %s2 = inlined_call_operand.hbm [shape: f32[32,128], index: 2, kind: input, shape index: {}]
  %s3 = inlined_call_operand.vmem [shape: f32[1,128], index: 3, kind: input, shape index: {}]
  %s4 = inlined_call_operand.hbm [shape: f32[32,128], index: 4, kind: input, shape index: {}]
  %s5 = inlined_call_operand.vmem [shape: f32[1,128], index: 5, kind: input, shape index: {}]
  %s6 = inlined_call_operand.hbm [shape: f32[32,128], index: 6, kind: input, shape index: {}]
  %s7 = inlined_call_operand.vmem [shape: f32[1,128], index: 7, kind: input, shape index: {}]
  %s8 = inlined_call_operand.hbm [shape: f32[2,8,128], index: 8, kind: output, shape index: {}]
  %s9 = sld [smem:[#allocation0]]
  $region85: #{tpu_custom_call.1} parent=0
    _
  %s11 = ssub.s32 1, %s9
  %s12 = scalar_select 0, %s11, %s9
  $region1: #{tpu_custom_call.1} parent=0
    #allocation2 [shape = 'u8[8192]{0}', space=vmem, size = 0x2000, scoped, tag = 'input window, operand 0']
    #allocation3 [shape = 's32[2]{0}', space=sflag, size = 0x8, scoped, tag = 'scoped memory for tpu_custom_call.1']
    #allocation4 [shape = 's32[2]{0}', space=sflag, size = 0x8, scoped, tag = 'scoped memory for tpu_custom_call.1']
    #allocation5 [shape = 'u8[16384]{0}', space=vmem, size = 0x4000, scoped, tag = 'input window, operand 1']
    #allocation6 [shape = 's32[2]{0}', space=sflag, size = 0x8, scoped, tag = 'scoped memory for tpu_custom_call.1']
    #allocation7 [shape = 'u8[16384]{0}', space=vmem, size = 0x4000, scoped, tag = 'input window, operand 2, single buffered']
    #allocation8 [shape = 'u8[16384]{0}', space=vmem, size = 0x4000, scoped, tag = 'input window, operand 4, single buffered']
    #allocation9 [shape = 's32[1]{0}', space=sflag, size = 0x4, scoped, tag = 'scoped memory for tpu_custom_call.1']
    #allocation10 [shape = 'u8[16384]{0}', space=vmem, size = 0x4000, scoped, tag = 'input window, operand 6, single buffered']
    #allocation11 [shape = 'u8[8192]{0}', space=vmem, size = 0x2000, scoped, tag = 'output window, operand 0']
    %13 = vsyncpa [#allocation3], 0
    %s14 = scalar_lea.sflag [#allocation3], 1
    %15 = vsyncpa %s14, 0
    %16 = vsyncpa [#allocation6], 0
    %s17 = scalar_lea.sflag [#allocation6], 1
    %18 = vsyncpa %s17, 0
    %19 = vsyncpa [#allocation9], 0
    %20 = vsyncpa [#allocation4], 0
    %s21 = scalar_lea.sflag [#allocation4], 1
    %22 = vsyncpa %s21, 0
    loop: start=0, step=1, limit=4
    $region2: #{tpu_custom_call.1} parent=1 // loop_pre_header
      _
    $region3: #{tpu_custom_call.1} parent=1 // loop_header
      %s24 = sphi 0, %s28
      %p25 = scmp.ge.s32.totalorder %s24, 4
      %s31 = sphi 0, %s43
      %s32 = sphi 0, %s39
      %s33 = sphi 0, %s31
      %s34 = sphi 0, %s32
      %s35 = sphi 0, %s33
      %s36 = sphi 0, %s34
      %s48 = sphi 0, %s50
      %s51 = sphi 0, %s48
      %s52 = sphi 0, %s51
      %s68 = sphi 0, %s52
      %s74 = sphi 0, %s76
      %s77 = sphi 0, %s74
      %s78 = sphi 0, %s77
      %s94 = sphi 0, %s78
      %s98 = sphi 0, %s98
      %s100 = sphi 0, %s98
      %s101 = sphi 0, %s100
      %s115 = sphi 0, %s101
      %s119 = sphi 0, %s119
      %s121 = sphi 0, %s119
      %s122 = sphi 0, %s121
      %s136 = sphi 0, %s122
      %s140 = sphi 0, %s140
      %s142 = sphi 0, %s140
      %s143 = sphi 0, %s142
      %s157 = sphi 0, %s143
      %s161 = sphi 0, %s161
      %s163 = sphi 0, %s161
      %s164 = sphi 0, %s163
      %s178 = sphi 0, %s164
      %s182 = sphi 0, %s182
      %s184 = sphi 0, %s182
      %s185 = sphi 0, %s184
      %s199 = sphi 0, %s185
      %s203 = sphi 0, %s203
      %s205 = sphi 0, %s203
      %s206 = sphi 0, %s205
      %s220 = sphi 0, %s206
      %s228 = sphi 0, %s230
      %s231 = sphi 0, %s228
      %s232 = sphi 0, %s231
      %s248 = sphi 0, %s232
    $region4: #{tpu_custom_call.1} parent=1 // loop_header_branch
      %27 = sbr.rel (%p25) target = $region8
    $region5: #{tpu_custom_call.1} parent=1 // loop_body
      %s29 = ssub.s32 %s24, 1
      %s30 = ssub.s32 %s24, 2
      %s37 = sadd.s32 1, %s32
      %p38 = scmp.ge.s32.totalorder %s37, 1
      %s39 = scalar_select %p38, 0, %s37
      %s40 = sadd.s32 1, %s31
      %s41 = scalar_select %p38, %s40, %s31
      %p42 = scmp.ge.s32.totalorder %s41, 2
      %s43 = scalar_select %p42, 0, %s41
      %s44 = ssub.s32 %s31, %s43
      %s45 = ssub.s32 %s32, %s39
      %s46 = sor.u32 %s44, %s45
      %p47 = scmp.eq.s32.totalorder %s46, 0
      %s49 = sadd.s32 %s48, 1
      %s50 = scalar_select %p47, %s48, %s49
      %p53 = pneg %p47
      %p54 = scmp.eq.s32.totalorder %s24, 1
      %p55 = por %p53, %p54
      %p56 = scmp.ne.s32.totalorder %s48, %s51
      %p57 = scmp.eq.s32.totalorder %s24, 0
      %p58 = por %p56, %p57
      %p59 = scmp.ne.s32.totalorder %s48, %s51
      %p60 = scmp.eq.s32.totalorder %s29, 1
      %p61 = por %p59, %p60
      %p62 = scmp.ne.s32.totalorder %s51, %s52
      %p63 = scmp.eq.s32.totalorder %s29, 0
      %p64 = por %p62, %p63
      %p65 = scmp.ne.s32.totalorder %s51, %s52
      %p66 = scmp.eq.s32.totalorder %s30, 1
      %p67 = por %p65, %p66
      %p69 = scmp.ne.s32.totalorder %s52, %s68
      %p70 = scmp.eq.s32.totalorder %s30, 0
      %p71 = por %p69, %p70
      %s72 = ssub.s32 %s31, %s43
      %p73 = scmp.eq.s32.totalorder %s72, 0
      %s75 = sadd.s32 %s74, 1
      %s76 = scalar_select %p73, %s74, %s75
      %p79 = pneg %p73
      %p80 = scmp.eq.s32.totalorder %s24, 1
      %p81 = por %p79, %p80
      %p82 = scmp.ne.s32.totalorder %s74, %s77
      %p83 = scmp.eq.s32.totalorder %s24, 0
      %p84 = por %p82, %p83
      %p85 = scmp.ne.s32.totalorder %s74, %s77
      %p86 = scmp.eq.s32.totalorder %s29, 1
      %p87 = por %p85, %p86
      %p88 = scmp.ne.s32.totalorder %s77, %s78
      %p89 = scmp.eq.s32.totalorder %s29, 0
      %p90 = por %p88, %p89
      %p91 = scmp.ne.s32.totalorder %s77, %s78
      %p92 = scmp.eq.s32.totalorder %s30, 1
      %p93 = por %p91, %p92
      %p95 = scmp.ne.s32.totalorder %s78, %s94
      %p96 = scmp.eq.s32.totalorder %s30, 0
      %p97 = por %p95, %p96
      %s99 = sadd.s32 %s98, 1
      %p102 = scmp.eq.s32.totalorder %s24, 1
      %p103 = scmp.ne.s32.totalorder %s98, %s100
      %p104 = scmp.eq.s32.totalorder %s24, 0
      %p105 = por %p103, %p104
      %p106 = scmp.ne.s32.totalorder %s98, %s100
      %p107 = scmp.eq.s32.totalorder %s29, 1
      %p108 = por %p106, %p107
      %p109 = scmp.ne.s32.totalorder %s100, %s101
      %p110 = scmp.eq.s32.totalorder %s29, 0
      %p111 = por %p109, %p110
      %p112 = scmp.ne.s32.totalorder %s100, %s101
      %p113 = scmp.eq.s32.totalorder %s30, 1
      %p114 = por %p112, %p113
      %p116 = scmp.ne.s32.totalorder %s101, %s115
      %p117 = scmp.eq.s32.totalorder %s30, 0
      %p118 = por %p116, %p117
      %s120 = sadd.s32 %s119, 1
      %p123 = scmp.eq.s32.totalorder %s24, 1
      %p124 = scmp.ne.s32.totalorder %s119, %s121
      %p125 = scmp.eq.s32.totalorder %s24, 0
      %p126 = por %p124, %p125
      %p127 = scmp.ne.s32.totalorder %s119, %s121
      %p128 = scmp.eq.s32.totalorder %s29, 1
      %p129 = por %p127, %p128
      %p130 = scmp.ne.s32.totalorder %s121, %s122
      %p131 = scmp.eq.s32.totalorder %s29, 0
      %p132 = por %p130, %p131
      %p133 = scmp.ne.s32.totalorder %s121, %s122
      %p134 = scmp.eq.s32.totalorder %s30, 1
      %p135 = por %p133, %p134
      %p137 = scmp.ne.s32.totalorder %s122, %s136
      %p138 = scmp.eq.s32.totalorder %s30, 0
      %p139 = por %p137, %p138
      %s141 = sadd.s32 %s140, 1
      %p144 = scmp.eq.s32.totalorder %s24, 1
      %p145 = scmp.ne.s32.totalorder %s140, %s142
      %p146 = scmp.eq.s32.totalorder %s24, 0
      %p147 = por %p145, %p146
      %p148 = scmp.ne.s32.totalorder %s140, %s142
      %p149 = scmp.eq.s32.totalorder %s29, 1
      %p150 = por %p148, %p149
      %p151 = scmp.ne.s32.totalorder %s142, %s143
      %p152 = scmp.eq.s32.totalorder %s29, 0
      %p153 = por %p151, %p152
      %p154 = scmp.ne.s32.totalorder %s142, %s143
      %p155 = scmp.eq.s32.totalorder %s30, 1
      %p156 = por %p154, %p155
      %p158 = scmp.ne.s32.totalorder %s143, %s157
      %p159 = scmp.eq.s32.totalorder %s30, 0
      %p160 = por %p158, %p159
      %s162 = sadd.s32 %s161, 1
      %p165 = scmp.eq.s32.totalorder %s24, 1
      %p166 = scmp.ne.s32.totalorder %s161, %s163
      %p167 = scmp.eq.s32.totalorder %s24, 0
      %p168 = por %p166, %p167
      %p169 = scmp.ne.s32.totalorder %s161, %s163
      %p170 = scmp.eq.s32.totalorder %s29, 1
      %p171 = por %p169, %p170
      %p172 = scmp.ne.s32.totalorder %s163, %s164
      %p173 = scmp.eq.s32.totalorder %s29, 0
      %p174 = por %p172, %p173
      %p175 = scmp.ne.s32.totalorder %s163, %s164
      %p176 = scmp.eq.s32.totalorder %s30, 1
      %p177 = por %p175, %p176
      %p179 = scmp.ne.s32.totalorder %s164, %s178
      %p180 = scmp.eq.s32.totalorder %s30, 0
      %p181 = por %p179, %p180
      %s183 = sadd.s32 %s182, 1
      %p186 = scmp.eq.s32.totalorder %s24, 1
      %p187 = scmp.ne.s32.totalorder %s182, %s184
      %p188 = scmp.eq.s32.totalorder %s24, 0
      %p189 = por %p187, %p188
      %p190 = scmp.ne.s32.totalorder %s182, %s184
      %p191 = scmp.eq.s32.totalorder %s29, 1
      %p192 = por %p190, %p191
      %p193 = scmp.ne.s32.totalorder %s184, %s185
      %p194 = scmp.eq.s32.totalorder %s29, 0
      %p195 = por %p193, %p194
      %p196 = scmp.ne.s32.totalorder %s184, %s185
      %p197 = scmp.eq.s32.totalorder %s30, 1
      %p198 = por %p196, %p197
      %p200 = scmp.ne.s32.totalorder %s185, %s199
      %p201 = scmp.eq.s32.totalorder %s30, 0
      %p202 = por %p200, %p201
      %s204 = sadd.s32 %s203, 1
      %p207 = scmp.eq.s32.totalorder %s24, 1
      %p208 = scmp.ne.s32.totalorder %s203, %s205
      %p209 = scmp.eq.s32.totalorder %s24, 0
      %p210 = por %p208, %p209
      %p211 = scmp.ne.s32.totalorder %s203, %s205
      %p212 = scmp.eq.s32.totalorder %s29, 1
      %p213 = por %p211, %p212
      %p214 = scmp.ne.s32.totalorder %s205, %s206
      %p215 = scmp.eq.s32.totalorder %s29, 0
      %p216 = por %p214, %p215
      %p217 = scmp.ne.s32.totalorder %s205, %s206
      %p218 = scmp.eq.s32.totalorder %s30, 1
      %p219 = por %p217, %p218
      %p221 = scmp.ne.s32.totalorder %s206, %s220
      %p222 = scmp.eq.s32.totalorder %s30, 0
      %p223 = por %p221, %p222
      %s224 = ssub.s32 %s31, %s43
      %s225 = ssub.s32 %s32, %s39
      %s226 = sor.u32 %s224, %s225
      %p227 = scmp.eq.s32.totalorder %s226, 0
      %s229 = sadd.s32 %s228, 1
      %s230 = scalar_select %p227, %s228, %s229
      %p233 = pneg %p227
      %p234 = scmp.eq.s32.totalorder %s24, 1
      %p235 = por %p233, %p234
      %p236 = scmp.ne.s32.totalorder %s228, %s231
      %p237 = scmp.eq.s32.totalorder %s24, 0
      %p238 = por %p236, %p237
      %p239 = scmp.ne.s32.totalorder %s228, %s231
      %p240 = scmp.eq.s32.totalorder %s29, 1
      %p241 = por %p239, %p240
      %p242 = scmp.ne.s32.totalorder %s231, %s232
      %p243 = scmp.eq.s32.totalorder %s29, 0
      %p244 = por %p242, %p243
      %p245 = scmp.ne.s32.totalorder %s231, %s232
      %p246 = scmp.eq.s32.totalorder %s30, 1
      %p247 = por %p245, %p246
      %p249 = scmp.ne.s32.totalorder %s232, %s248
      %p250 = scmp.eq.s32.totalorder %s30, 0
      %p251 = por %p249, %p250
      %p252 = scmp.le.s32.totalorder 1, %s24
      %p253 = scmp.lt.s32.totalorder %s24, 3
      %p254 = pnand %p252, %p253
      %p255 = pneg %p254
      // Predicated region
      $region9: #{tpu_custom_call.1} parent=5 // pred_check
        _
      $region10: #{tpu_custom_call.1} parent=5 // pred_check_branch
        %257 = sbr.rel (%p254) target = $region12
      $region11: #{tpu_custom_call.1} parent=5 // pred_region
        %s258 = ssub.s32 %s24, 1
        // Predicated region
        $region13: #{tpu_custom_call.1} parent=11 // pred_check
          %p259 = pneg %p111
        $region14: #{tpu_custom_call.1} parent=11 // pred_check_branch
          %261 = sbr.rel (%p259) target = $region16
        $region15: #{tpu_custom_call.1} parent=11 // pred_region
          %s263 = ssub.s32 512, 512
          %264 = vsyncadd [#allocation6], %s263
          %s265 = sshll.u32 [#allocation7], 4
          %s266 = int_to_ptr.vmem [resolvable:$true] %s265
          %271 = dma.hbm_to_vmem [thread:$0]  %s2, 512, %s266, [#allocation6], 128, 128, 8
        $region16: #{tpu_custom_call.1} parent=11 // pred_fallthru
          _
        // Predicated region
        $region17: #{tpu_custom_call.1} parent=11 // pred_check
          %p272 = pneg %p132
        $region18: #{tpu_custom_call.1} parent=11 // pred_check_branch
          %274 = sbr.rel (%p272) target = $region20
        $region19: #{tpu_custom_call.1} parent=11 // pred_region
          _
        $region20: #{tpu_custom_call.1} parent=11 // pred_fallthru
          _
        // Predicated region
        $region21: #{tpu_custom_call.1} parent=11 // pred_check
          %p275 = pneg %p153
        $region22: #{tpu_custom_call.1} parent=11 // pred_check_branch
          %277 = sbr.rel (%p275) target = $region24
        $region23: #{tpu_custom_call.1} parent=11 // pred_region
          %s279 = ssub.s32 512, 512
          %280 = vsyncadd [#allocation9], %s279
          %s281 = sshll.u32 [#allocation8], 4
          %s282 = int_to_ptr.vmem [resolvable:$true] %s281
          %287 = dma.hbm_to_vmem [thread:$0]  %s4, 512, %s282, [#allocation9], 128, 128, 8
        $region24: #{tpu_custom_call.1} parent=11 // pred_fallthru
          _
        // Predicated region
        $region25: #{tpu_custom_call.1} parent=11 // pred_check
          %p288 = pneg %p174
        $region26: #{tpu_custom_call.1} parent=11 // pred_check_branch
          %290 = sbr.rel (%p288) target = $region28
        $region27: #{tpu_custom_call.1} parent=11 // pred_region
          _
        $region28: #{tpu_custom_call.1} parent=11 // pred_fallthru
          _
        // Predicated region
        $region29: #{tpu_custom_call.1} parent=11 // pred_check
          %p291 = pneg %p195
        $region30: #{tpu_custom_call.1} parent=11 // pred_check_branch
          %293 = sbr.rel (%p291) target = $region32
        $region31: #{tpu_custom_call.1} parent=11 // pred_region
          %s295 = ssub.s32 512, 512
          %296 = vsyncadd [#allocation9], %s295
          %s297 = sshll.u32 [#allocation10], 4
          %s298 = int_to_ptr.vmem [resolvable:$true] %s297
          %303 = dma.hbm_to_vmem [thread:$0]  %s6, 512, %s298, [#allocation9], 128, 128, 8
        $region32: #{tpu_custom_call.1} parent=11 // pred_fallthru
          _
        // Predicated region
        $region33: #{tpu_custom_call.1} parent=11 // pred_check
          %p304 = pneg %p216
        $region34: #{tpu_custom_call.1} parent=11 // pred_check_branch
          %306 = sbr.rel (%p304) target = $region36
        $region35: #{tpu_custom_call.1} parent=11 // pred_region
          _
        $region36: #{tpu_custom_call.1} parent=11 // pred_fallthru
          _
      $region12: #{tpu_custom_call.1} parent=5 // pred_fallthru
        _
      %p307 = scmp.lt.s32.totalorder %s24, 2
      // Predicated region
      $region37: #{tpu_custom_call.1} parent=5 // pred_check
        %p308 = pneg %p307
      $region38: #{tpu_custom_call.1} parent=5 // pred_check_branch
        %310 = sbr.rel (%p308) target = $region40
      $region39: #{tpu_custom_call.1} parent=5 // pred_region
        // Predicated region
        $region41: #{tpu_custom_call.1} parent=39 // pred_check
          %p311 = pneg %p58
        $region42: #{tpu_custom_call.1} parent=39 // pred_check_branch
          %313 = sbr.rel (%p311) target = $region44
        $region43: #{tpu_custom_call.1} parent=39 // pred_region
          %s314 = sand.u32 %s48, 1
          %s315 = scalar_lea.sflag [#allocation3], %s314
          %s316 = sand.u32 %s48, 1
          %s317 = smul.addr %s316, 8
          %s318 = scalar_lea.vmem [#allocation2], %s317
          %s320 = ssub.s32 128, 128
          %321 = vsyncadd %s315, %s320
          %s322 = sadd.s32 %s32, %s31
          %s323 = smul.addr %s322, 128
          %s324 = scalar_lea.hbm %s0, %s323
          %s326 = sshll.u32 %s318, 4
          %s327 = int_to_ptr.vmem [resolvable:$true] %s326
          %329 = dma.hbm_to_vmem [thread:$0]  %s324, 128, %s327, %s315
        $region44: #{tpu_custom_call.1} parent=39 // pred_fallthru
          _
        // Predicated region
        $region45: #{tpu_custom_call.1} parent=39 // pred_check
          %p330 = pneg %p84
        $region46: #{tpu_custom_call.1} parent=39 // pred_check_branch
          %332 = sbr.rel (%p330) target = $region48
        $region47: #{tpu_custom_call.1} parent=39 // pred_region
          %s333 = sand.u32 %s24, 1
          %s334 = scalar_lea.sflag [#allocation6], %s333
          %s335 = sand.u32 %s74, 1
          %s336 = smul.addr %s335, 16
          %s337 = scalar_lea.vmem [#allocation5], %s336
          %s339 = ssub.s32 256, 256
          %340 = vsyncadd %s334, %s339
          %s341 = smul.addr %s31, 2
          %s342 = smul.addr %s341, 128
          %s343 = scalar_lea.hbm %s1, %s342
          %s344 = sshll.u32 %s337, 4
          %s345 = int_to_ptr.vmem [resolvable:$true] %s344
          %350 = dma.hbm_to_vmem [thread:$0]  %s343, 256, %s345, %s334, 128, 128, 8
        $region48: #{tpu_custom_call.1} parent=39 // pred_fallthru
          _
      $region40: #{tpu_custom_call.1} parent=5 // pred_fallthru
        _
      %p351 = scmp.le.s32.totalorder 1, %s24
      %p352 = scmp.lt.s32.totalorder %s24, 3
      %p353 = pnand %p351, %p352
      %p354 = pneg %p353
      // Predicated region
      $region49: #{tpu_custom_call.1} parent=5 // pred_check
        _
      $region50: #{tpu_custom_call.1} parent=5 // pred_check_branch
        %356 = sbr.rel (%p353) target = $region52
      $region51: #{tpu_custom_call.1} parent=5 // pred_region
        %s357 = ssub.s32 %s24, 1
        %s358 = sand.u32 %s51, 1
        %s359 = scalar_lea.sflag [#allocation3], %s358
        %s360 = sand.u32 %s51, 1
        %s361 = smul.addr %s360, 8
        %s362 = scalar_lea.vmem [#allocation2], %s361
        // Predicated region
        $region53: #{tpu_custom_call.1} parent=51 // pred_check
          %p363 = pneg %p64
        $region54: #{tpu_custom_call.1} parent=51 // pred_check_branch
          %365 = sbr.rel (%p363) target = $region56
        $region55: #{tpu_custom_call.1} parent=51 // pred_region
          %366 = dma.done %s359, 128
        $region56: #{tpu_custom_call.1} parent=51 // pred_fallthru
          _
        %s367 = sand.u32 %s29, 1
        %s368 = scalar_lea.sflag [#allocation6], %s367
        %s369 = sand.u32 %s77, 1
        %s370 = smul.addr %s369, 16
        %s371 = scalar_lea.vmem [#allocation5], %s370
        // Predicated region
        $region57: #{tpu_custom_call.1} parent=51 // pred_check
          %p372 = pneg %p90
        $region58: #{tpu_custom_call.1} parent=51 // pred_check_branch
          %374 = sbr.rel (%p372) target = $region60
        $region59: #{tpu_custom_call.1} parent=51 // pred_region
          %375 = dma.done %s368, 256
        $region60: #{tpu_custom_call.1} parent=51 // pred_fallthru
          _
        // Predicated region
        $region61: #{tpu_custom_call.1} parent=51 // pred_check
          %p376 = pneg %p111
        $region62: #{tpu_custom_call.1} parent=51 // pred_check_branch
          %378 = sbr.rel (%p376) target = $region64
        $region63: #{tpu_custom_call.1} parent=51 // pred_region
          %379 = dma.done [#allocation6], 512
        $region64: #{tpu_custom_call.1} parent=51 // pred_fallthru
          _
        // Predicated region
        $region65: #{tpu_custom_call.1} parent=51 // pred_check
          %p380 = pneg %p153
        $region66: #{tpu_custom_call.1} parent=51 // pred_check_branch
          %382 = sbr.rel (%p380) target = $region68
        $region67: #{tpu_custom_call.1} parent=51 // pred_region
          %383 = dma.done [#allocation9], 512
        $region68: #{tpu_custom_call.1} parent=51 // pred_fallthru
          _
        // Predicated region
        $region69: #{tpu_custom_call.1} parent=51 // pred_check
          %p384 = pneg %p195
        $region70: #{tpu_custom_call.1} parent=51 // pred_check_branch
          %386 = sbr.rel (%p384) target = $region72
        $region71: #{tpu_custom_call.1} parent=51 // pred_region
          %387 = dma.done [#allocation9], 512
        $region72: #{tpu_custom_call.1} parent=51 // pred_fallthru
          _
        %s388 = sand.u32 %s51, 1
        %s389 = scalar_lea.sflag [#allocation3], %s388
        %s390 = sand.u32 %s51, 1
        %s391 = smul.addr %s390, 8
        %s392 = scalar_lea.vmem [#allocation2], %s391
        %p393 = pneg %p64
        %p394 = pneg %p61
        %s395 = sand.u32 %s29, 1
        %s396 = scalar_lea.sflag [#allocation6], %s395
        %s397 = sand.u32 %s77, 1
        %s398 = smul.addr %s397, 16
        %s399 = scalar_lea.vmem [#allocation5], %s398
        %p400 = pneg %p90
        %p401 = pneg %p87
        %p402 = pneg %p111
        %p403 = pneg %p108
        %p404 = pneg %p132
        %p405 = pneg %p129
        %p406 = pneg %p153
        %p407 = pneg %p150
        %p408 = pneg %p174
        %p409 = pneg %p171
        %p410 = pneg %p195
        %p411 = pneg %p192
        %p412 = pneg %p216
        %p413 = pneg %p213
        %p414 = pneg %p244
        %p415 = pneg %p241
        %s416 = sand.u32 %s231, 1
        %s417 = scalar_lea.sflag [#allocation4], %s416
        %s418 = sand.u32 %s231, 1
        %s419 = smul.addr %s418, 8
        %s420 = scalar_lea.vmem [#allocation11], %s419
        %v421 = vld [vmem:[%s362] sm:$0xff]
        %v422 = vld [vmem:[%s371] sm:$0xff]
        %v423 = vld [vmem:[%s371 + $0x8] sm:$0xff]
        %v424 = vld [vmem:[#allocation7] sm:$0xff]
        %v425 = vld [vmem:[#allocation7 + $0x8] sm:$0xff]
        %v426 = vld [vmem:[#allocation7 + $0x10] sm:$0xff]
        %v427 = vld [vmem:[#allocation7 + $0x18] sm:$0xff]
        %v428 = vld [vmem:[#allocation8] sm:$0xff]
        %v429 = vld [vmem:[#allocation8 + $0x8] sm:$0xff]
        %v430 = vld [vmem:[#allocation8 + $0x10] sm:$0xff]
        %v431 = vld [vmem:[#allocation8 + $0x18] sm:$0xff]
        %v432 = vld [vmem:[#allocation10] sm:$0xff]
        %v433 = vld [vmem:[#allocation10 + $0x8] sm:$0xff]
        %v434 = vld [vmem:[#allocation10 + $0x10] sm:$0xff]
        %v435 = vld [vmem:[#allocation10 + $0x18] sm:$0xff]
        %v436 = vld [vmem:[%s3] sm:$0x1]
        %v438 = vlaneseq
        %v439 = vshrl.u32 %v438, 7
        %v440 = vsub.s32 0, %v439
        %v441 = vrot.slane %v436, %v440
        %vm443 = vcmask 261120
        %v445 = vsel %vm443, %v421, 0
        %447 = vmatprep.subr.mxu0 0.0
        %448 = vmatpush1.msra.mxu0 %v424
        %449 = vmatprep.subr.mxu0 0.0
        %450 = vmatpush1.msra.mxu0 %v425
        %451 = vmatprep.subr.mxu0 0.0
        %452 = vmatpush1.msra.mxu0 %v426
        %453 = vmatprep.subr.mxu0 0.0
        %454 = vmatpush1.msra.mxu0 %v427
        %455 = vmatprep.subr.mxu0 0.0
        %456 = vmatpush1.msra.mxu0 0.0
        %457 = vmatprep.subr.mxu0 0.0
        %458 = vmatpush1.msra.mxu0 0.0
        %459 = vmatprep.subr.mxu0 0.0
        %460 = vmatpush1.msra.mxu0 0.0
        %461 = vmatprep.subr.mxu0 0.0
        %462 = vmatpush1.msra.mxu0 0.0
        %463 = vmatprep.subr.mxu0 0.0
        %464 = vmatpush1.msra.mxu0 0.0
        %465 = vmatprep.subr.mxu0 0.0
        %466 = vmatpush1.msra.mxu0 0.0
        %467 = vmatprep.subr.mxu0 0.0
        %468 = vmatpush1.msra.mxu0 0.0
        %469 = vmatprep.subr.mxu0 0.0
        %470 = vmatpush1.msra.mxu0 0.0
        %471 = vmatprep.subr.mxu0 0.0
        %472 = vmatpush1.msra.mxu0 0.0
        %473 = vmatprep.subr.mxu0 0.0
        %474 = vmatpush1.msra.mxu0 0.0
        %475 = vmatprep.subr.mxu0 0.0
        %476 = vmatpush1.msra.mxu0 0.0
        %477 = vmatprep.subr.mxu0 0.0
        %478 = vmatpush1.msra.mxu0 0.0
        %479 = vmatprep.subr.mxu0 0.0
        %480 = vmatpush1.msra.mxu0 0.0
        %481 = vmatprep.subr.mxu0 0.0
        %482 = vmatpush1.msra.mxu0 0.0
        %483 = vmatprep.subr.mxu0 0.0
        %484 = vmatpush1.msra.mxu0 0.0
        %485 = vmatprep.subr.mxu0 0.0
        %486 = vmatpush1.msra.mxu0 0.0
        %487 = vmatprep.subr.mxu0 0.0
        %488 = vmatpush1.msra.mxu0 0.0
        %489 = vmatprep.subr.mxu0 0.0
        %490 = vmatpush1.msra.mxu0 0.0
        %491 = vmatprep.subr.mxu0 0.0
        %492 = vmatpush1.msra.mxu0 0.0
        %493 = vmatprep.subr.mxu0 0.0
        %494 = vmatpush1.msra.mxu0 0.0
        %495 = vmatprep.subr.mxu0 0.0
        %496 = vmatpush1.msra.mxu0 0.0
        %497 = vmatprep.subr.mxu0 0.0
        %498 = vmatpush1.msra.mxu0 0.0
        %499 = vmatprep.subr.mxu0 0.0
        %500 = vmatpush1.msra.mxu0 0.0
        %501 = vmatprep.subr.mxu0 0.0
        %502 = vmatpush1.msra.mxu0 0.0
        %503 = vmatprep.subr.mxu0 0.0
        %504 = vmatpush1.msra.mxu0 0.0
        %505 = vmatprep.subr.mxu0 0.0
        %506 = vmatpush1.msra.mxu0 0.0
        %507 = vmatprep.subr.mxu0 0.0
        %508 = vmatpush1.msra.mxu0 0.0
        %509 = vmatprep.subr.mxu0 0.0
        %510 = vmatpush1.msra.mxu0 0.0
        %511 = vmatprep.mubr.f32.mxu0 0.0
        %512 = vmatmul.mubr.f32.gmra.mrb[0].mxu0 %v445
        %v513 = vpop.f32.mrb[0].mxu0
        %v514 = vadd.f32 %v441, %v513
        %v515 = vpop.f32.mrb[0].mxu0
        %516 = vdwg.mxu0
        %v517 = vmul.f32 %v514, 0.25
        %v518 = vld [vmem:[%s5] sm:$0x1]
        %v520 = vlaneseq
        %v521 = vshrl.u32 %v520, 7
        %v522 = vsub.s32 0, %v521
        %v523 = vrot.slane %v518, %v522
        %v526 = vsel %vm443, %v422, 0
        %v529 = vsel %vm443, %v423, 0
        %531 = vmatprep.subr.mxu0 0.0
        %532 = vmatpush1.msra.mxu0 %v428
        %533 = vmatprep.subr.mxu0 0.0
        %534 = vmatpush1.msra.mxu0 %v429
        %535 = vmatprep.subr.mxu0 0.0
        %536 = vmatpush1.msra.mxu0 %v430
        %537 = vmatprep.subr.mxu0 0.0
        %538 = vmatpush1.msra.mxu0 %v431
        %539 = vmatprep.subr.mxu0 0.0
        %540 = vmatpush1.msra.mxu0 0.0
        %541 = vmatprep.subr.mxu0 0.0
        %542 = vmatpush1.msra.mxu0 0.0
        %543 = vmatprep.subr.mxu0 0.0
        %544 = vmatpush1.msra.mxu0 0.0
        %545 = vmatprep.subr.mxu0 0.0
        %546 = vmatpush1.msra.mxu0 0.0
        %547 = vmatprep.subr.mxu0 0.0
        %548 = vmatpush1.msra.mxu0 0.0
        %549 = vmatprep.subr.mxu0 0.0
        %550 = vmatpush1.msra.mxu0 0.0
        %551 = vmatprep.subr.mxu0 0.0
        %552 = vmatpush1.msra.mxu0 0.0
        %553 = vmatprep.subr.mxu0 0.0
        %554 = vmatpush1.msra.mxu0 0.0
        %555 = vmatprep.subr.mxu0 0.0
        %556 = vmatpush1.msra.mxu0 0.0
        %557 = vmatprep.subr.mxu0 0.0
        %558 = vmatpush1.msra.mxu0 0.0
        %559 = vmatprep.subr.mxu0 0.0
        %560 = vmatpush1.msra.mxu0 0.0
        %561 = vmatprep.subr.mxu0 0.0
        %562 = vmatpush1.msra.mxu0 0.0
        %563 = vmatprep.subr.mxu0 0.0
        %564 = vmatpush1.msra.mxu0 0.0
        %565 = vmatprep.subr.mxu0 0.0
        %566 = vmatpush1.msra.mxu0 0.0
        %567 = vmatprep.subr.mxu0 0.0
        %568 = vmatpush1.msra.mxu0 0.0
        %569 = vmatprep.subr.mxu0 0.0
        %570 = vmatpush1.msra.mxu0 0.0
        %571 = vmatprep.subr.mxu0 0.0
        %572 = vmatpush1.msra.mxu0 0.0
        %573 = vmatprep.subr.mxu0 0.0
        %574 = vmatpush1.msra.mxu0 0.0
        %575 = vmatprep.subr.mxu0 0.0
        %576 = vmatpush1.msra.mxu0 0.0
        %577 = vmatprep.subr.mxu0 0.0
        %578 = vmatpush1.msra.mxu0 0.0
        %579 = vmatprep.subr.mxu0 0.0
        %580 = vmatpush1.msra.mxu0 0.0
        %581 = vmatprep.subr.mxu0 0.0
        %582 = vmatpush1.msra.mxu0 0.0
        %583 = vmatprep.subr.mxu0 0.0
        %584 = vmatpush1.msra.mxu0 0.0
        %585 = vmatprep.subr.mxu0 0.0
        %586 = vmatpush1.msra.mxu0 0.0
        %587 = vmatprep.subr.mxu0 0.0
        %588 = vmatpush1.msra.mxu0 0.0
        %589 = vmatprep.subr.mxu0 0.0
        %590 = vmatpush1.msra.mxu0 0.0
        %591 = vmatprep.subr.mxu0 0.0
        %592 = vmatpush1.msra.mxu0 0.0
        %593 = vmatprep.subr.mxu0 0.0
        %594 = vmatpush1.msra.mxu0 0.0
        %595 = vmatprep.mubr.f32.mxu0 0.0
        %596 = vmatmul.mubr.f32.gmra.mrb[0].mxu0 %v526
        %v597 = vpop.f32.mrb[0].mxu0
        %v598 = vadd.f32 %v523, %v597
        %v599 = vpop.f32.mrb[0].mxu0
        %600 = vmatprep.mubr.f32.mxu0 0.0
        %601 = vmatmul.mubr.f32.gmra.mrb[0].mxu0 %v529
        %v602 = vpop.f32.mrb[0].mxu0
        %v603 = vadd.f32 %v523, %v602
        %v604 = vpop.f32.mrb[0].mxu0
        %605 = vdwg.mxu0
        %v606 = vld [vmem:[%s7] sm:$0x1]
        %v608 = vlaneseq
        %v609 = vshrl.u32 %v608, 7
        %v610 = vsub.s32 0, %v609
        %v611 = vrot.slane %v606, %v610
        %613 = vmatprep.subr.mxu0 0.0
        %614 = vmatpush1.msra.mxu0 %v432
        %615 = vmatprep.subr.mxu0 0.0
        %616 = vmatpush1.msra.mxu0 %v433
        %617 = vmatprep.subr.mxu0 0.0
        %618 = vmatpush1.msra.mxu0 %v434
        %619 = vmatprep.subr.mxu0 0.0
        %620 = vmatpush1.msra.mxu0 %v435
        %621 = vmatprep.subr.mxu0 0.0
        %622 = vmatpush1.msra.mxu0 0.0
        %623 = vmatprep.subr.mxu0 0.0
        %624 = vmatpush1.msra.mxu0 0.0
        %625 = vmatprep.subr.mxu0 0.0
        %626 = vmatpush1.msra.mxu0 0.0
        %627 = vmatprep.subr.mxu0 0.0
        %628 = vmatpush1.msra.mxu0 0.0
        %629 = vmatprep.subr.mxu0 0.0
        %630 = vmatpush1.msra.mxu0 0.0
        %631 = vmatprep.subr.mxu0 0.0
        %632 = vmatpush1.msra.mxu0 0.0
        %633 = vmatprep.subr.mxu0 0.0
        %634 = vmatpush1.msra.mxu0 0.0
        %635 = vmatprep.subr.mxu0 0.0
        %636 = vmatpush1.msra.mxu0 0.0
        %637 = vmatprep.subr.mxu0 0.0
        %638 = vmatpush1.msra.mxu0 0.0
        %639 = vmatprep.subr.mxu0 0.0
        %640 = vmatpush1.msra.mxu0 0.0
        %641 = vmatprep.subr.mxu0 0.0
        %642 = vmatpush1.msra.mxu0 0.0
        %643 = vmatprep.subr.mxu0 0.0
        %644 = vmatpush1.msra.mxu0 0.0
        %645 = vmatprep.subr.mxu0 0.0
        %646 = vmatpush1.msra.mxu0 0.0
        %647 = vmatprep.subr.mxu0 0.0
        %648 = vmatpush1.msra.mxu0 0.0
        %649 = vmatprep.subr.mxu0 0.0
        %650 = vmatpush1.msra.mxu0 0.0
        %651 = vmatprep.subr.mxu0 0.0
        %652 = vmatpush1.msra.mxu0 0.0
        %653 = vmatprep.subr.mxu0 0.0
        %654 = vmatpush1.msra.mxu0 0.0
        %655 = vmatprep.subr.mxu0 0.0
        %656 = vmatpush1.msra.mxu0 0.0
        %657 = vmatprep.subr.mxu0 0.0
        %658 = vmatpush1.msra.mxu0 0.0
        %659 = vmatprep.subr.mxu0 0.0
        %660 = vmatpush1.msra.mxu0 0.0
        %661 = vmatprep.subr.mxu0 0.0
        %662 = vmatpush1.msra.mxu0 0.0
        %663 = vmatprep.subr.mxu0 0.0
        %664 = vmatpush1.msra.mxu0 0.0
        %665 = vmatprep.subr.mxu0 0.0
        %666 = vmatpush1.msra.mxu0 0.0
        %667 = vmatprep.subr.mxu0 0.0
        %668 = vmatpush1.msra.mxu0 0.0
        %669 = vmatprep.subr.mxu0 0.0
        %670 = vmatpush1.msra.mxu0 0.0
        %671 = vmatprep.subr.mxu0 0.0
        %672 = vmatpush1.msra.mxu0 0.0
        %673 = vmatprep.subr.mxu0 0.0
        %674 = vmatpush1.msra.mxu0 0.0
        %675 = vmatprep.subr.mxu0 0.0
        %676 = vmatpush1.msra.mxu0 0.0
        %677 = vmatprep.mubr.f32.mxu0 0.0
        %678 = vmatmul.mubr.f32.gmra.mrb[0].mxu0 %v526
        %v679 = vpop.f32.mrb[0].mxu0
        %v680 = vadd.f32 %v611, %v679
        %v681 = vpop.f32.mrb[0].mxu0
        %682 = vmatprep.mubr.f32.mxu0 0.0
        %683 = vmatmul.mubr.f32.gmra.mrb[0].mxu0 %v529
        %v684 = vpop.f32.mrb[0].mxu0
        %v685 = vadd.f32 %v611, %v684
        %v686 = vpop.f32.mrb[0].mxu0
        %687 = vdwg.mxu0
        %688 = vmatprep.subr.mxu0 0.0
        %689 = vmatpush1.xpose.msra.mxu0 %v598
        %690 = vmatprep.subr.mxu0 0.0
        %691 = vmatpush1.xpose.msra.mxu0 %v603
        %692 = vmatprep.subr.mxu0 0.0
        %693 = vmatpush1.xpose.msra.mxu0 0.0
        %694 = vmatprep.subr.mxu0 0.0
        %695 = vmatpush1.xpose.msra.mxu0 0.0
        %696 = vmatprep.subr.mxu0 0.0
        %697 = vmatpush1.xpose.msra.mxu0 0.0
        %698 = vmatprep.subr.mxu0 0.0
        %699 = vmatpush1.xpose.msra.mxu0 0.0
        %700 = vmatprep.subr.mxu0 0.0
        %701 = vmatpush1.xpose.msra.mxu0 0.0
        %702 = vmatprep.subr.mxu0 0.0
        %703 = vmatpush1.xpose.msra.mxu0 0.0
        %704 = vmatprep.subr.mxu0 0.0
        %705 = vmatpush1.xpose.msra.mxu0 0.0
        %706 = vmatprep.subr.mxu0 0.0
        %707 = vmatpush1.xpose.msra.mxu0 0.0
        %708 = vmatprep.subr.mxu0 0.0
        %709 = vmatpush1.xpose.msra.mxu0 0.0
        %710 = vmatprep.subr.mxu0 0.0
        %711 = vmatpush1.xpose.msra.mxu0 0.0
        %712 = vmatprep.subr.mxu0 0.0
        %713 = vmatpush1.xpose.msra.mxu0 0.0
        %714 = vmatprep.subr.mxu0 0.0
        %715 = vmatpush1.xpose.msra.mxu0 0.0
        %716 = vmatprep.subr.mxu0 0.0
        %717 = vmatpush1.xpose.msra.mxu0 0.0
        %718 = vmatprep.subr.mxu0 0.0
        %719 = vmatpush1.xpose.msra.mxu0 0.0
        %720 = vmatprep.subr.mxu0 0.0
        %721 = vmatpush1.xpose.msra.mxu0 0.0
        %722 = vmatprep.subr.mxu0 0.0
        %723 = vmatpush1.xpose.msra.mxu0 0.0
        %724 = vmatprep.subr.mxu0 0.0
        %725 = vmatpush1.xpose.msra.mxu0 0.0
        %726 = vmatprep.subr.mxu0 0.0
        %727 = vmatpush1.xpose.msra.mxu0 0.0
        %728 = vmatprep.subr.mxu0 0.0
        %729 = vmatpush1.xpose.msra.mxu0 0.0
        %730 = vmatprep.subr.mxu0 0.0
        %731 = vmatpush1.xpose.msra.mxu0 0.0
        %732 = vmatprep.subr.mxu0 0.0
        %733 = vmatpush1.xpose.msra.mxu0 0.0
        %734 = vmatprep.subr.mxu0 0.0
        %735 = vmatpush1.xpose.msra.mxu0 0.0
        %736 = vmatprep.subr.mxu0 0.0
        %737 = vmatpush1.xpose.msra.mxu0 0.0
        %738 = vmatprep.subr.mxu0 0.0
        %739 = vmatpush1.xpose.msra.mxu0 0.0
        %740 = vmatprep.subr.mxu0 0.0
        %741 = vmatpush1.xpose.msra.mxu0 0.0
        %742 = vmatprep.subr.mxu0 0.0
        %743 = vmatpush1.xpose.msra.mxu0 0.0
        %744 = vmatprep.subr.mxu0 0.0
        %745 = vmatpush1.xpose.msra.mxu0 0.0
        %746 = vmatprep.subr.mxu0 0.0
        %747 = vmatpush1.xpose.msra.mxu0 0.0
        %748 = vmatprep.subr.mxu0 0.0
        %749 = vmatpush1.xpose.msra.mxu0 0.0
        %750 = vmatprep.subr.mxu0 0.0
        %751 = vmatpush1.xpose.msra.mxu0 0.0
        %752 = vmatprep.mubr.f32.mxu0 0.0
        %753 = vmatmul.mubr.f32.gmra.mrb[0].mxu0 %v517
        %v754 = vpop.f32.mrb[0].mxu0
        %v755 = vadd.f32 0.0, %v754
        %v756 = vpop.f32.mrb[0].mxu0
        %757 = vdwg.mxu0
        %vm758 = vcmask 130048
        %v759 = vsel %vm758, %v755, -inf
        %760 = vmax.xlane.f32.xlu0 %v759
        %v761 = vpop.xlane.xlu0 %760
        %v762 = vsub.f32 %v755, %v761
        %v763 = vmul.f32 %v762, 1.442695
        %v764 = vpow.pop %v763
        %v765 = vsel %vm758, %v764, 0.0
        %766 = vadd.xlane.f32.xlu0 %v765
        %v767 = vpop.xlane.xlu0 %766
        %v769 = vsel %vm758, %v764, 0
        %771 = vmatprep.subr.mxu0 0.0
        %772 = vmatpush1.msra.mxu0 %v680
        %773 = vmatprep.subr.mxu0 0.0
        %774 = vmatpush1.msra.mxu0 %v685
        %775 = vmatprep.subr.mxu0 0.0
        %776 = vmatpush1.msra.mxu0 0.0
        %777 = vmatprep.subr.mxu0 0.0
        %778 = vmatpush1.msra.mxu0 0.0
        %779 = vmatprep.subr.mxu0 0.0
        %780 = vmatpush1.msra.mxu0 0.0
        %781 = vmatprep.subr.mxu0 0.0
        %782 = vmatpush1.msra.mxu0 0.0
        %783 = vmatprep.subr.mxu0 0.0
        %784 = vmatpush1.msra.mxu0 0.0
        %785 = vmatprep.subr.mxu0 0.0
        %786 = vmatpush1.msra.mxu0 0.0
        %787 = vmatprep.subr.mxu0 0.0
        %788 = vmatpush1.msra.mxu0 0.0
        %789 = vmatprep.subr.mxu0 0.0
        %790 = vmatpush1.msra.mxu0 0.0
        %791 = vmatprep.subr.mxu0 0.0
        %792 = vmatpush1.msra.mxu0 0.0
        %793 = vmatprep.subr.mxu0 0.0
        %794 = vmatpush1.msra.mxu0 0.0
        %795 = vmatprep.subr.mxu0 0.0
        %796 = vmatpush1.msra.mxu0 0.0
        %797 = vmatprep.subr.mxu0 0.0
        %798 = vmatpush1.msra.mxu0 0.0
        %799 = vmatprep.subr.mxu0 0.0
        %800 = vmatpush1.msra.mxu0 0.0
        %801 = vmatprep.subr.mxu0 0.0
        %802 = vmatpush1.msra.mxu0 0.0
        %803 = vmatprep.subr.mxu0 0.0
        %804 = vmatpush1.msra.mxu0 0.0
        %805 = vmatprep.subr.mxu0 0.0
        %806 = vmatpush1.msra.mxu0 0.0
        %807 = vmatprep.subr.mxu0 0.0
        %808 = vmatpush1.msra.mxu0 0.0
        %809 = vmatprep.subr.mxu0 0.0
        %810 = vmatpush1.msra.mxu0 0.0
        %811 = vmatprep.subr.mxu0 0.0
        %812 = vmatpush1.msra.mxu0 0.0
        %813 = vmatprep.subr.mxu0 0.0
        %814 = vmatpush1.msra.mxu0 0.0
        %815 = vmatprep.subr.mxu0 0.0
        %816 = vmatpush1.msra.mxu0 0.0
        %817 = vmatprep.subr.mxu0 0.0
        %818 = vmatpush1.msra.mxu0 0.0
        %819 = vmatprep.subr.mxu0 0.0
        %820 = vmatpush1.msra.mxu0 0.0
        %821 = vmatprep.subr.mxu0 0.0
        %822 = vmatpush1.msra.mxu0 0.0
        %823 = vmatprep.subr.mxu0 0.0
        %824 = vmatpush1.msra.mxu0 0.0
        %825 = vmatprep.subr.mxu0 0.0
        %826 = vmatpush1.msra.mxu0 0.0
        %827 = vmatprep.subr.mxu0 0.0
        %828 = vmatpush1.msra.mxu0 0.0
        %829 = vmatprep.subr.mxu0 0.0
        %830 = vmatpush1.msra.mxu0 0.0
        %831 = vmatprep.subr.mxu0 0.0
        %832 = vmatpush1.msra.mxu0 0.0
        %833 = vmatprep.subr.mxu0 0.0
        %834 = vmatpush1.msra.mxu0 0.0
        %835 = vmatprep.mubr.f32.mxu0 0.0
        %836 = vmatmul.mubr.f32.gmra.mrb[0].mxu0 %v769
        %v837 = vpop.f32.mrb[0].mxu0
        %v838 = vadd.f32 0.0, %v837
        %v839 = vpop.f32.mrb[0].mxu0
        %840 = vdwg.mxu0
        %v841 = vrcp.pop %v767
        %v842 = vmul.f32 %v838, %v841
        %843 = vst [vmem:[%s420] sm:$0xff] %v842
        %s844 = sand.u32 %s231, 1
        %s845 = scalar_lea.sflag [#allocation4], %s844
        %s846 = sand.u32 %s231, 1
        %s847 = smul.addr %s846, 8
        %s848 = scalar_lea.vmem [#allocation11], %s847
        // Predicated region
        $region73: #{tpu_custom_call.1} parent=51 // pred_check
          %p849 = pneg %p241
        $region74: #{tpu_custom_call.1} parent=51 // pred_check_branch
          %851 = sbr.rel (%p849) target = $region76
        $region75: #{tpu_custom_call.1} parent=51 // pred_region
          %s853 = ssub.s32 128, 128
          %854 = vsyncadd %s845, %s853
          %s855 = sadd.s32 %s34, %s33
          %s856 = smul.addr %s855, 128
          %s857 = scalar_lea.hbm %s8, %s856
          %s859 = sshll.u32 %s848, 4
          %s860 = int_to_ptr.vmem [resolvable:$true] %s859
          %862 = dma.vmem_to_hbm [thread:$0]  %s860, 128, %s857, %s845
        $region76: #{tpu_custom_call.1} parent=51 // pred_fallthru
          _
      $region52: #{tpu_custom_call.1} parent=5 // pred_fallthru
        _
      %p863 = scmp.le.s32.totalorder 2, %s24
      // Predicated region
      $region77: #{tpu_custom_call.1} parent=5 // pred_check
        %p864 = pneg %p863
      $region78: #{tpu_custom_call.1} parent=5 // pred_check_branch
        %866 = sbr.rel (%p864) target = $region80
      $region79: #{tpu_custom_call.1} parent=5 // pred_region
        %s867 = ssub.s32 %s24, 2
        // Predicated region
        $region81: #{tpu_custom_call.1} parent=79 // pred_check
          %p868 = pneg %p247
        $region82: #{tpu_custom_call.1} parent=79 // pred_check_branch
          %870 = sbr.rel (%p868) target = $region84
        $region83: #{tpu_custom_call.1} parent=79 // pred_region
          %s871 = sand.u32 %s232, 1
          %s872 = scalar_lea.sflag [#allocation4], %s871
          %s873 = sand.u32 %s232, 1
          %s874 = smul.addr %s873, 8
          %s875 = scalar_lea.vmem [#allocation11], %s874
          %876 = dma.done %s872, 128
        $region84: #{tpu_custom_call.1} parent=79 // pred_fallthru
          _
      $region80: #{tpu_custom_call.1} parent=5 // pred_fallthru
        _
    $region6: #{tpu_custom_call.1} parent=1 // loop_footer
      %s28 = sadd.s32 1, %s24
    $region7: #{tpu_custom_call.1} parent=1 // loop_footer_branch
      %23 = sbr.rel target = $region3
    $region8: #{tpu_custom_call.1} parent=1 // loop_exit
      _
    %877 = vsyncpa [#allocation3], 1
    %s878 = scalar_lea.sflag [#allocation3], 1
    %879 = vsyncpa %s878, 1
    %880 = vsyncpa [#allocation6], 1
    %s881 = scalar_lea.sflag [#allocation6], 1
    %882 = vsyncpa %s881, 1
    %883 = vsyncpa [#allocation9], 1
    %884 = vsyncpa [#allocation4], 1
    %s885 = scalar_lea.sflag [#allocation4], 1
    %886 = vsyncpa %s885, 1

</llo_original>
